<compile_context>
chip_gen: v5e
topology: v5e:2x2
jax: 0.10.0
libtpu: 0.0.40
codegen_flags: <defaults>
</compile_context>

<pallas_src>
import functools

import jax
import jax.numpy as jnp
import numpy as np
from jax.experimental import pallas as pl
from jax.experimental.pallas import tpu as pltpu


# --------------------------------- kernel -----------------------------------

def _gml_loss_kernel(f_ref, lblr_ref, loss_ref,
                     g_ref, cnt_ref, fsq_ref, acc_ref,
                     mc_ref, mcsq_ref, present_ref,
                     *, n_real, inv_two_var, loss_type, n_pad):
    phase = pl.program_id(0)
    tile = pl.program_id(1)
    last_tile = pl.num_programs(1) - 1

    TN, Dp = f_ref.shape
    Up = g_ref.shape[0]
    inv_n = 1.0 / n_real

    # ------------------------------ init (once) -----------------------------
    @pl.when(jnp.logical_and(phase == 0, tile == 0))
    def _init():
        g_ref[...] = jnp.zeros_like(g_ref)
        cnt_ref[...] = jnp.zeros_like(cnt_ref)
        fsq_ref[...] = jnp.zeros_like(fsq_ref)
        acc_ref[...] = jnp.zeros_like(acc_ref)

    # -------------- phase 0: class sums, counts, sum ||f||^2 ----------------
    @pl.when(phase == 0)
    def _phase0():
        f = f_ref[...]                                        # (TN, Dp) cd
        lbl_row = lblr_ref[0]                                 # (1, TN) int32
        hit = (jax.lax.broadcasted_iota(jnp.int32, (Up, TN), 0) == lbl_row)
        onehot_t = hit.astype(f.dtype)                        # (Up, TN)
        # per-class feature sums: one (Up,TN)x(TN,Dp) MXU dot per tile
        g_ref[...] += jnp.dot(onehot_t, f, preferred_element_type=jnp.float32)
        # per-class counts in row layout via an MXU dot (exact in f32 accum)
        cnt_blk = jax.lax.dot_general(jnp.ones((8, TN), f.dtype), onehot_t,
                                      (((1,), (1,)), ((), ())),
                                      preferred_element_type=jnp.float32)
        cnt_ref[...] += cnt_blk[0:1, :]                       # (1, Up)
        ff = f.astype(jnp.float32)
        fsq_ref[...] += jnp.sum(ff * ff, keepdims=True)       # (1, 1)

    # closed-form -(sum of picked logits) from phase-0 accumulators
    def _neg_picked_and_gsq():
        g = g_ref[...]                                        # (Up, Dp) f32
        ones_blk = jnp.ones((8, Dp), jnp.float32)
        gsq = jax.lax.dot_general(ones_blk, g * g,            # ||G_u||^2 row
                                  (((1,), (1,)), ((), ())),
                                  preferred_element_type=jnp.float32)[0:1, :]
        sum_gg = jnp.sum(gsq, axis=1, keepdims=True)                      # (1,1)
        sum_cnt_gg = jnp.sum(cnt_ref[...] * gsq, axis=1, keepdims=True)   # (1,1)
        quad = (fsq_ref[...] - 2.0 * inv_n * sum_gg
                + (inv_n * inv_n) * sum_cnt_gg)               # sum ||f - mc_y||^2
        return quad * inv_two_var, gsq

    if loss_type == "likelihood":
        # single phase: features streamed exactly once
        @pl.when(jnp.logical_and(phase == 0, tile == last_tile))
        def _write_likelihood():
            neg_picked, _ = _neg_picked_and_gsq()
            loss_ref[...] = neg_picked
    else:
        @pl.when(phase == 1)
        def _phase1():
            # finalize on the first phase-1 tile (explicitly ordered before the
            # per-tile loss math below)
            @pl.when(tile == 0)
            def _finalize():
                neg_picked, gsq = _neg_picked_and_gsq()
                acc_ref[...] = neg_picked                     # -(sum picked)
                mcsq_ref[...] = gsq * (inv_n * inv_n)         # ||mc_u||^2 row
                mc_ref[...] = (g_ref[...] * inv_n).astype(mc_ref.dtype)
                present_ref[...] = (cnt_ref[...] > 0.0).astype(jnp.float32)

            f = f_ref[...]                                    # (TN, Dp) cd
            ff = f.astype(jnp.float32)
            f_sq = jnp.sum(ff * ff, axis=1, keepdims=True)    # (TN, 1)
            cross = jax.lax.dot_general(f, mc_ref[...],       # (TN, Up) MXU
                                        (((1,), (1,)), ((), ())),
                                        preferred_element_type=jnp.float32)
            # norm_zi_mc = -||f - mc||^2 / (2 var), expanded quadratic (f32)
            logits = (2.0 * cross - f_sq - mcsq_ref[...]) * inv_two_var
            # present-class log-sum-exp denominator: VPU multiply + lane reduce
            norms = jnp.sum(jnp.exp(logits) * present_ref[...],
                            axis=1, keepdims=True)            # (TN, 1)
            acc_ref[...] += jnp.sum(jnp.log(norms + 1e-8), keepdims=True)

            @pl.when(tile == last_tile)
            def _write_out():
                total = acc_ref[...]                          # (1, 1)
                if n_pad > 0:
                    # padded rows have f == 0; subtract their constant
                    # contribution in closed form instead of masking per row.
                    pad_norm = jnp.sum(jnp.exp(-mcsq_ref[...] * inv_two_var)
                                       * present_ref[...], axis=1, keepdims=True)
                    total = total - float(n_pad) * jnp.log(pad_norm + 1e-8)
                if loss_type == "L":
                    total = total / jnp.sum(present_ref[...], axis=1,
                                            keepdims=True)
                loss_ref[...] = total


# ------------------------------- JAX wrapper ---------------------------------

def _round_up(x, m):
    return ((x + m - 1) // m) * m


def _vmem_capacity_bytes():
    try:
        return int(pltpu.get_tpu_info().vmem_capacity_bytes)
    except Exception:                                   # pragma: no cover
        return 64 * 1024 * 1024                         # conservative (v7x TC)


def gml_loss(features, labels, *, var=1.0, loss_type="map", num_classes=None,
             tile_rows=None, compute_dtype=None):
    """Pallas port of GMLLoss.forward (default path).

    features: (B, nviews, D) float; labels: (B,) int.
    Supported loss_type: 'map' (default), 'likelihood', 'L'.
    Pass num_classes explicitly when labels are traced (jit).
    """
    if loss_type not in ("map", "likelihood", "L"):
        # TODO(synk): loss_type 'L1', 'Ic', 'LIc' not ported.
        raise NotImplementedError(f"loss_type={loss_type!r} not implemented")

    B, V, D = features.shape
    N = B * V
    labels = jnp.asarray(labels).reshape(-1).astype(jnp.int32)
    if num_classes is None:
        # mirrors `uniq = range(labels.max()+1)` (needs concrete labels).
        num_classes = int(jax.device_get(jnp.max(labels))) + 1

    # streaming dtype: caller's dtype (bf16 halves HBM bytes), else f32
    cd = np.dtype(features.dtype) if compute_dtype is None else np.dtype(compute_dtype)
    if cd not in (np.dtype(jnp.bfloat16), np.dtype(jnp.float32)):
        cd = np.dtype(jnp.float32)
    feat_bytes = cd.itemsize

    # Loss is row-permutation invariant -> no transpose/cat: plain reshape +
    # repeat gives the same value as torch.cat(torch.unbind(features,1),0).
    feats_flat = features.reshape(N, D)
    if feats_flat.dtype != cd:
        feats_flat = feats_flat.astype(cd)
    lab_flat = jnp.repeat(labels, V)                                    # (N,)

    # ---- lane / sublane padding (keep vregs dense) --------------------------
    Dp = _round_up(max(D, 128), 128)
    Up = _round_up(max(num_classes, 128), 128)

    # ---- tile sizing against the per-generation VMEM budget -----------------
    vmem_cap = _vmem_capacity_bytes()
    hard_limit = int(min(0.8 * vmem_cap, 112 * (1 << 20)))
    scratch_bytes = Up * Dp * (4 + feat_bytes) + (1 << 16)
    # per-row working set: double-buffered feature block, its f32 upcast,
    # label row, one-hot / logits / exp temporaries
    per_row_bytes = 2 * Dp * feat_bytes + 4 * Dp + Up * (feat_bytes + 9) + 64
    if tile_rows is None:
        budget = max(hard_limit - scratch_bytes - (4 << 20), 1 << 20)
        TN = budget // per_row_bytes
        TN = min(TN, (8 << 20) // max(Dp * feat_bytes, 1))   # <= 8 MiB / block
        TN = min(TN, 1 << 15)
        TN = min(TN, _round_up(N, 8))
        TN = max((TN // 8) * 8, 8)
        if TN >= 256:
            TN = (TN // 128) * 128
    else:
        TN = _round_up(max(int(tile_rows), 8), 8)
    Np = _round_up(N, TN)
    n_tiles = Np // TN
    vmem_limit = int(min(max(scratch_bytes + 2 * per_row_bytes * TN + (16 << 20),
                             32 << 20),
                         int(0.9 * vmem_cap)))

    if (Np != N) or (Dp != D):
        f_in = jnp.zeros((Np, Dp), cd).at[:N, :D].set(feats_flat)
    else:
        f_in = feats_flat
    lbl_row = (jnp.full((Np,), -1, jnp.int32).at[:N].set(lab_flat)
               .reshape(n_tiles, 1, TN))

    n_phases = 1 if loss_type == "likelihood" else 2
    kernel = functools.partial(
        _gml_loss_kernel,
        n_real=float(N),
        inv_two_var=float(1.0 / (2.0 * var)),
        loss_type=loss_type,
        n_pad=int(Np - N))

    loss = pl.pallas_call(
        kernel,
        out_shape=jax.ShapeDtypeStruct((1, 1), jnp.float32),
        grid=(n_phases, n_tiles),                 # (phase, row-tile)
        in_specs=[
            pl.BlockSpec((TN, Dp), lambda p, i: (i, 0)),
            pl.BlockSpec((1, 1, TN), lambda p, i: (i, 0, 0)),
        ],
        out_specs=pl.BlockSpec((1, 1), lambda p, i: (0, 0)),
        scratch_shapes=[
            pltpu.VMEM((Up, Dp), jnp.float32),    # per-class feature sums G_u
            pltpu.VMEM((1, Up), jnp.float32),     # per-class counts (row)
            pltpu.VMEM((1, 1), jnp.float32),      # sum ||f_i||^2
            pltpu.VMEM((1, 1), jnp.float32),      # scalar loss accumulator
            pltpu.VMEM((Up, Dp), cd),             # means in streaming dtype
            pltpu.VMEM((1, Up), jnp.float32),     # ||mc_u||^2 row
            pltpu.VMEM((1, Up), jnp.float32),     # present-class row mask
        ],
        compiler_params=pltpu.CompilerParams(
            dimension_semantics=("arbitrary", "arbitrary"),
            vmem_limit_bytes=vmem_limit),
    )(f_in, lbl_row)
    return loss[0, 0]


# ----------------------- pure-JAX reference (checking) -----------------------

def gml_loss_ref(features, labels, *, var=1.0, loss_type="map"):
    B, V, D = features.shape
    N = B * V
    labels = jnp.asarray(labels).reshape(-1).astype(jnp.int32)
    U = int(jax.device_get(jnp.max(labels))) + 1
    feats_flat = jnp.transpose(features, (1, 0, 2)).reshape(N, D)
    feats_flat = feats_flat.astype(jnp.float32)
    lab_flat = jnp.tile(labels, (V,))
    mask = (jnp.arange(U)[:, None] == lab_flat[None, :]).astype(jnp.float32)
    mc = (feats_flat[None, :, :] * mask[:, :, None]).mean(axis=1)     # (U, D)
    mask_mean = np.unique(np.asarray(jax.device_get(labels)))
    zi = feats_flat[None, :, :] - mc[:, None, :]                      # (U, N, D)
    norm = -jnp.sum(zi ** 2, axis=2) / (2.0 * var)                    # (U, N)
    norms_exp = jnp.exp(norm)[mask_mean, :].sum(0)                    # (N,)
    if loss_type == "likelihood":
        return jnp.sum(-(norm * mask)[mask_mean, :])
    loss = -((norm - jnp.log(norms_exp + 1e-8)) * mask)[mask_mean, :]
    if loss_type == "map":
        return jnp.sum(loss)
    if loss_type == "L":
        return jnp.mean(jnp.sum(loss, axis=1))
    raise NotImplementedError(loss_type)


# ----------------------------------- main ------------------------------------

if __name__ == "__main__":
    key = jax.random.PRNGKey(0)
    k1, k2 = jax.random.split(key)
    B, V, D = 8, 2, 32
    features = jax.random.normal(k1, (B, V, D), dtype=jnp.float32)
    labels = jax.random.randint(k2, (B,), 0, 6)

    # multi-tile accumulation path (2 tiles), all loss types, f32 streaming
    for lt in ("map", "likelihood", "L"):
        out = gml_loss(features, labels, var=1.0, loss_type=lt, tile_rows=8)
        jax.block_until_ready(out)
        ref = gml_loss_ref(features, labels, var=1.0, loss_type=lt)
        np.testing.assert_allclose(np.asarray(out), np.asarray(ref),
                                   rtol=2e-3, atol=2e-3)

    # auto-tiled (single tile) and padded-rows (TN > N) paths
    ref_map = gml_loss_ref(features, labels, var=1.0, loss_type="map")
    for tr in (None, 24):
        out = gml_loss(features, labels, var=1.0, loss_type="map", tile_rows=tr)
        jax.block_until_ready(out)
        np.testing.assert_allclose(np.asarray(out), np.asarray(ref_map),
                                   rtol=2e-3, atol=2e-3)

    # bf16 streaming path (halved HBM traffic); compared against the reference
    # evaluated on the same bf16-rounded features.
    f_bf16 = features.astype(jnp.bfloat16)
    ref16 = gml_loss_ref(f_bf16.astype(jnp.float32), labels, var=1.0,
                         loss_type="map")
    out16 = gml_loss(f_bf16, labels, var=1.0, loss_type="map")
    jax.block_until_ready(out16)
    np.testing.assert_allclose(np.asarray(out16), np.asarray(ref16),
                               rtol=2e-2, atol=2e-2)

    print("KERNEL_OK")
</pallas_src>

<mosaic_0001>
module attributes {stable_mosaic.version = 11 : i64} {
  func.func @_gml_loss_kernel(%arg0: i32, %arg1: i32, %arg2: memref<8x128xf32, #tpu.memory_space<vmem>>, %arg3: memref<1x1x8xi32, #tpu.memory_space<vmem>>, %arg4: memref<1x1xf32, #tpu.memory_space<vmem>>, %arg5: memref<128x128xf32, #tpu.memory_space<vmem>>, %arg6: memref<1x128xf32, #tpu.memory_space<vmem>>, %arg7: memref<1x1xf32, #tpu.memory_space<vmem>>, %arg8: memref<1x1xf32, #tpu.memory_space<vmem>>, %arg9: memref<128x128xf32, #tpu.memory_space<vmem>>, %arg10: memref<1x128xf32, #tpu.memory_space<vmem>>, %arg11: memref<1x128xf32, #tpu.memory_space<vmem>>) attributes {dimension_semantics = [#tpu.dimension_semantics<arbitrary>, #tpu.dimension_semantics<arbitrary>], iteration_bounds = array<i64: 2, 2>, scalar_prefetch = 0 : i64, scratch_operands = 7 : i64, tpu.core_type = #tpu.core_type<tc>, window_params = [{transform_indices = @transform_0, window_bounds = array<i64: 8, 128>}, {transform_indices = @transform_1, window_bounds = array<i64: 1, 1, 8>}, {pipeline_mode = #tpu.pipeline_mode<synchronous>, transform_indices = @transform_2, window_bounds = array<i64: 1, 1>}]} {
    %c0_i32 = arith.constant 0 : i32
    %0 = arith.cmpi eq, %arg0, %c0_i32 : i32
    %c0_i32_0 = arith.constant 0 : i32
    %1 = arith.cmpi eq, %arg1, %c0_i32_0 : i32
    %2 = arith.andi %0, %1 : i1
    %3 = arith.extui %2 : i1 to i32
    %c0_i32_1 = arith.constant 0 : i32
    %4 = arith.cmpi ne, %3, %c0_i32_1 : i32
    scf.if %4 {
      %cst = arith.constant 0.000000e+00 : f32
      %11 = vector.broadcast %cst : f32 to vector<128x128xf32>
      %c0 = arith.constant 0 : index
      %c0_5 = arith.constant 0 : index
      %12 = vector.load %arg5[%c0, %c0_5] : memref<128x128xf32, #tpu.memory_space<vmem>>, vector<128x128xf32>
      tpu.vector_store %arg5[%c0, %c0_5], %11 {strides = array<i32>} : memref<128x128xf32, #tpu.memory_space<vmem>>, vector<128x128xf32>,
      %cst_6 = arith.constant 0.000000e+00 : f32
      %13 = vector.broadcast %cst_6 : f32 to vector<1x128xf32>
      %c0_7 = arith.constant 0 : index
      %c0_8 = arith.constant 0 : index
      %14 = vector.load %arg6[%c0_7, %c0_8] : memref<1x128xf32, #tpu.memory_space<vmem>>, vector<1x128xf32>
      tpu.vector_store %arg6[%c0_7, %c0_8], %13 {strides = array<i32>} : memref<1x128xf32, #tpu.memory_space<vmem>>, vector<1x128xf32>,
      %cst_9 = arith.constant 0.000000e+00 : f32
      %15 = vector.broadcast %cst_9 : f32 to vector<1x1xf32>
      %c0_10 = arith.constant 0 : index
      %c0_11 = arith.constant 0 : index
      %16 = vector.load %arg7[%c0_10, %c0_11] : memref<1x1xf32, #tpu.memory_space<vmem>>, vector<1x1xf32>
      tpu.vector_store %arg7[%c0_10, %c0_11], %15 {strides = array<i32>} : memref<1x1xf32, #tpu.memory_space<vmem>>, vector<1x1xf32>,
      %cst_12 = arith.constant 0.000000e+00 : f32
      %17 = vector.broadcast %cst_12 : f32 to vector<1x1xf32>
      %c0_13 = arith.constant 0 : index
      %c0_14 = arith.constant 0 : index
      %18 = vector.load %arg8[%c0_13, %c0_14] : memref<1x1xf32, #tpu.memory_space<vmem>>, vector<1x1xf32>
      tpu.vector_store %arg8[%c0_13, %c0_14], %17 {strides = array<i32>} : memref<1x1xf32, #tpu.memory_space<vmem>>, vector<1x1xf32>,
    } else {
    }
    %c0_i32_2 = arith.constant 0 : i32
    %5 = arith.cmpi eq, %arg0, %c0_i32_2 : i32
    %6 = arith.extui %5 : i1 to i32
    %c0_i32_3 = arith.constant 0 : i32
    %7 = arith.cmpi ne, %6, %c0_i32_3 : i32
    scf.if %7 {
      %c0 = arith.constant 0 : index
      %c0_5 = arith.constant 0 : index
      %11 = vector.load %arg2[%c0, %c0_5] : memref<8x128xf32, #tpu.memory_space<vmem>>, vector<8x128xf32>
      %c0_6 = arith.constant 0 : index
      %c0_7 = arith.constant 0 : index
      %c0_8 = arith.constant 0 : index
      %12 = vector.load %arg3[%c0_6, %c0_7, %c0_8] : memref<1x1x8xi32, #tpu.memory_space<vmem>>, vector<1x1x8xi32>
      %13 = vector.shape_cast %12 : vector<1x1x8xi32> to vector<1x8xi32>
      %14 = tpu.iota {dimensions = array<i32: 0>} : vector<128x8xi32>
      %15 = vector.broadcast %13 : vector<1x8xi32> to vector<128x8xi32>
      %16 = arith.cmpi eq, %14, %15 : vector<128x8xi32>
      %17 = arith.extui %16 : vector<128x8xi1> to vector<128x8xi32>
      %18 = arith.sitofp %17 : vector<128x8xi32> to vector<128x8xf32>
      %c0_9 = arith.constant 0 : index
      %c0_10 = arith.constant 0 : index
      %19 = vector.load %arg5[%c0_9, %c0_10] : memref<128x128xf32, #tpu.memory_space<vmem>>, vector<128x128xf32>
      %cst = arith.constant dense<0.000000e+00> : vector<128x128xf32>
      %20 = tpu.matmul %18, %11, %cst {dimension_numbers = #tpu.dot_dimension_numbers<[1], [0], [0], [1], [0, 0, 1, 1], [], []>} : vector<128x8xf32>, vector<8x128xf32>, vector<128x128xf32> -> vector<128x128xf32>
      %21 = arith.addf %19, %20 : vector<128x128xf32>
      %c0_11 = arith.constant 0 : index
      %c0_12 = arith.constant 0 : index
      %22 = vector.load %arg5[%c0_11, %c0_12] : memref<128x128xf32, #tpu.memory_space<vmem>>, vector<128x128xf32>
      tpu.vector_store %arg5[%c0_11, %c0_12], %21 {strides = array<i32>} : memref<128x128xf32, #tpu.memory_space<vmem>>, vector<128x128xf32>,
      %cst_13 = arith.constant 1.000000e+00 : f32
      %23 = vector.broadcast %cst_13 : f32 to vector<8x8xf32>
      %cst_14 = arith.constant dense<0.000000e+00> : vector<8x128xf32>
      %24 = tpu.matmul %23, %18, %cst_14 {dimension_numbers = #tpu.dot_dimension_numbers<[1], [1], [0], [0], [0, 0, 1, 0], [], []>} : vector<8x8xf32>, vector<128x8xf32>, vector<8x128xf32> -> vector<8x128xf32>
      %c0_15 = arith.constant 0 : index
      %c0_16 = arith.constant 0 : index
      %25 = vector.load %arg6[%c0_15, %c0_16] : memref<1x128xf32, #tpu.memory_space<vmem>>, vector<1x128xf32>
      %26 = vector.extract_strided_slice %24 {offsets = [0, 0], sizes = [1, 128], strides = [1, 1]} : vector<8x128xf32> to vector<1x128xf32>
      %27 = arith.addf %25, %26 : vector<1x128xf32>
      %c0_17 = arith.constant 0 : index
      %c0_18 = arith.constant 0 : index
      %28 = vector.load %arg6[%c0_17, %c0_18] : memref<1x128xf32, #tpu.memory_space<vmem>>, vector<1x128xf32>
      tpu.vector_store %arg6[%c0_17, %c0_18], %27 {strides = array<i32>} : memref<1x128xf32, #tpu.memory_space<vmem>>, vector<1x128xf32>,
      %c0_19 = arith.constant 0 : index
      %c0_20 = arith.constant 0 : index
      %29 = vector.load %arg7[%c0_19, %c0_20] : memref<1x1xf32, #tpu.memory_space<vmem>>, vector<1x1xf32>
      %30 = arith.mulf %11, %11 : vector<8x128xf32>
      %31 = vector.shape_cast %30 : vector<8x128xf32> to vector<1x8x128xf32>
      %cst_21 = arith.constant dense<0.000000e+00> : vector<1xf32>
      %32 = vector.multi_reduction <add>, %31, %cst_21 [1, 2] : vector<1x8x128xf32> to vector<1xf32>
      %33 = vector.shape_cast %32 : vector<1xf32> to vector<1x1x1xf32>
      %34 = vector.extract %33[0, 0, 0] : f32 from vector<1x1x1xf32>
      %35 = vector.broadcast %34 : f32 to vector<1x1xf32>
      %36 = arith.addf %29, %35 : vector<1x1xf32>
      %c0_22 = arith.constant 0 : index
      %c0_23 = arith.constant 0 : index
      %37 = vector.load %arg7[%c0_22, %c0_23] : memref<1x1xf32, #tpu.memory_space<vmem>>, vector<1x1xf32>
      tpu.vector_store %arg7[%c0_22, %c0_23], %36 {strides = array<i32>} : memref<1x1xf32, #tpu.memory_space<vmem>>, vector<1x1xf32>,
    } else {
    }
    %c1_i32 = arith.constant 1 : i32
    %8 = arith.cmpi eq, %arg0, %c1_i32 : i32
    %9 = arith.extui %8 : i1 to i32
    %c0_i32_4 = arith.constant 0 : i32
    %10 = arith.cmpi ne, %9, %c0_i32_4 : i32
    scf.if %10 {
      %c0_i32_5 = arith.constant 0 : i32
      %11 = arith.cmpi eq, %arg1, %c0_i32_5 : i32
      %12 = arith.extui %11 : i1 to i32
      %c0_i32_6 = arith.constant 0 : i32
      %13 = arith.cmpi ne, %12, %c0_i32_6 : i32
      scf.if %13 {
        %c0_26 = arith.constant 0 : index
        %c0_27 = arith.constant 0 : index
        %49 = vector.load %arg5[%c0_26, %c0_27] : memref<128x128xf32, #tpu.memory_space<vmem>>, vector<128x128xf32>
        %cst_28 = arith.constant 1.000000e+00 : f32
        %50 = vector.broadcast %cst_28 : f32 to vector<8x128xf32>
        %51 = arith.mulf %49, %49 : vector<128x128xf32>
        %cst_29 = arith.constant dense<0.000000e+00> : vector<8x128xf32>
        %52 = tpu.matmul %50, %51, %cst_29 {dimension_numbers = #tpu.dot_dimension_numbers<[1], [1], [0], [0], [0, 0, 1, 0], [], []>} : vector<8x128xf32>, vector<128x128xf32>, vector<8x128xf32> -> vector<8x128xf32>
        %53 = vector.extract_strided_slice %52 {offsets = [0, 0], sizes = [1, 128], strides = [1, 1]} : vector<8x128xf32> to vector<1x128xf32>
        %cst_30 = arith.constant dense<0.000000e+00> : vector<1xf32>
        %54 = vector.multi_reduction <add>, %53, %cst_30 [1] : vector<1x128xf32> to vector<1xf32>
        %55 = vector.shape_cast %54 : vector<1xf32> to vector<1x1xf32>
        %c0_31 = arith.constant 0 : index
        %c0_32 = arith.constant 0 : index
        %56 = vector.load %arg6[%c0_31, %c0_32] : memref<1x128xf32, #tpu.memory_space<vmem>>, vector<1x128xf32>
        %57 = arith.mulf %56, %53 : vector<1x128xf32>
        %cst_33 = arith.constant dense<0.000000e+00> : vector<1xf32>
        %58 = vector.multi_reduction <add>, %57, %cst_33 [1] : vector<1x128xf32> to vector<1xf32>
        %59 = vector.shape_cast %58 : vector<1xf32> to vector<1x1xf32>
        %c0_34 = arith.constant 0 : index
        %c0_35 = arith.constant 0 : index
        %60 = vector.load %arg7[%c0_34, %c0_35] : memref<1x1xf32, #tpu.memory_space<vmem>>, vector<1x1xf32>
        %cst_36 = arith.constant 1.250000e-01 : f32
        %61 = vector.broadcast %cst_36 : f32 to vector<1x1xf32>
        %62 = arith.mulf %61, %55 : vector<1x1xf32>
        %63 = arith.subf %60, %62 : vector<1x1xf32>
        %cst_37 = arith.constant 3.906250e-03 : f32
        %64 = vector.broadcast %cst_37 : f32 to vector<1x1xf32>
        %65 = arith.mulf %64, %59 : vector<1x1xf32>
        %66 = arith.addf %63, %65 : vector<1x1xf32>
        %cst_38 = arith.constant 5.000000e-01 : f32
        %67 = vector.broadcast %cst_38 : f32 to vector<1x1xf32>
        %68 = arith.mulf %66, %67 : vector<1x1xf32>
        %c0_39 = arith.constant 0 : index
        %c0_40 = arith.constant 0 : index
        %69 = vector.load %arg8[%c0_39, %c0_40] : memref<1x1xf32, #tpu.memory_space<vmem>>, vector<1x1xf32>
        tpu.vector_store %arg8[%c0_39, %c0_40], %68 {strides = array<i32>} : memref<1x1xf32, #tpu.memory_space<vmem>>, vector<1x1xf32>,
        %cst_41 = arith.constant 3.906250e-03 : f32
        %70 = vector.broadcast %cst_41 : f32 to vector<1x128xf32>
        %71 = arith.mulf %53, %70 : vector<1x128xf32>
        %c0_42 = arith.constant 0 : index
        %c0_43 = arith.constant 0 : index
        %72 = vector.load %arg10[%c0_42, %c0_43] : memref<1x128xf32, #tpu.memory_space<vmem>>, vector<1x128xf32>
        tpu.vector_store %arg10[%c0_42, %c0_43], %71 {strides = array<i32>} : memref<1x128xf32, #tpu.memory_space<vmem>>, vector<1x128xf32>,
        %c0_44 = arith.constant 0 : index
        %c0_45 = arith.constant 0 : index
        %73 = vector.load %arg5[%c0_44, %c0_45] : memref<128x128xf32, #tpu.memory_space<vmem>>, vector<128x128xf32>
        %cst_46 = arith.constant 6.250000e-02 : f32
        %74 = vector.broadcast %cst_46 : f32 to vector<128x128xf32>
        %75 = arith.mulf %73, %74 : vector<128x128xf32>
        %c0_47 = arith.constant 0 : index
        %c0_48 = arith.constant 0 : index
        %76 = vector.load %arg9[%c0_47, %c0_48] : memref<128x128xf32, #tpu.memory_space<vmem>>, vector<128x128xf32>
        tpu.vector_store %arg9[%c0_47, %c0_48], %75 {strides = array<i32>} : memref<128x128xf32, #tpu.memory_space<vmem>>, vector<128x128xf32>,
        %c0_49 = arith.constant 0 : index
        %c0_50 = arith.constant 0 : index
        %77 = vector.load %arg6[%c0_49, %c0_50] : memref<1x128xf32, #tpu.memory_space<vmem>>, vector<1x128xf32>
        %cst_51 = arith.constant 0.000000e+00 : f32
        %78 = vector.broadcast %cst_51 : f32 to vector<1x128xf32>
        %79 = arith.cmpf ogt, %77, %78 : vector<1x128xf32>
        %80 = arith.extui %79 : vector<1x128xi1> to vector<1x128xi32>
        %81 = arith.sitofp %80 : vector<1x128xi32> to vector<1x128xf32>
        %c0_52 = arith.constant 0 : index
        %c0_53 = arith.constant 0 : index
        %82 = vector.load %arg11[%c0_52, %c0_53] : memref<1x128xf32, #tpu.memory_space<vmem>>, vector<1x128xf32>
        tpu.vector_store %arg11[%c0_52, %c0_53], %81 {strides = array<i32>} : memref<1x128xf32, #tpu.memory_space<vmem>>, vector<1x128xf32>,
      } else {
      }
      %c0 = arith.constant 0 : index
      %c0_7 = arith.constant 0 : index
      %14 = vector.load %arg2[%c0, %c0_7] : memref<8x128xf32, #tpu.memory_space<vmem>>, vector<8x128xf32>
      %15 = arith.mulf %14, %14 : vector<8x128xf32>
      %cst = arith.constant dense<0.000000e+00> : vector<8xf32>
      %16 = vector.multi_reduction <add>, %15, %cst [1] : vector<8x128xf32> to vector<8xf32>
      %17 = vector.shape_cast %16 : vector<8xf32> to vector<8x1xf32>
      %c0_8 = arith.constant 0 : index
      %c0_9 = arith.constant 0 : index
      %18 = vector.load %arg9[%c0_8, %c0_9] : memref<128x128xf32, #tpu.memory_space<vmem>>, vector<128x128xf32>
      %cst_10 = arith.constant dense<0.000000e+00> : vector<8x128xf32>
      %19 = tpu.matmul %14, %18, %cst_10 {dimension_numbers = #tpu.dot_dimension_numbers<[1], [1], [0], [0], [0, 0, 1, 0], [], []>} : vector<8x128xf32>, vector<128x128xf32>, vector<8x128xf32> -> vector<8x128xf32>
      %cst_11 = arith.constant 2.000000e+00 : f32
      %20 = vector.broadcast %cst_11 : f32 to vector<8x128xf32>
      %21 = arith.mulf %20, %19 : vector<8x128xf32>
      %22 = vector.broadcast %17 : vector<8x1xf32> to vector<8x128xf32>
      %23 = arith.subf %21, %22 : vector<8x128xf32>
      %c0_12 = arith.constant 0 : index
      %c0_13 = arith.constant 0 : index
      %24 = vector.load %arg10[%c0_12, %c0_13] : memref<1x128xf32, #tpu.memory_space<vmem>>, vector<1x128xf32>
      %25 = vector.broadcast %24 : vector<1x128xf32> to vector<8x128xf32>
      %26 = arith.subf %23, %25 : vector<8x128xf32>
      %cst_14 = arith.constant 5.000000e-01 : f32
      %27 = vector.broadcast %cst_14 : f32 to vector<8x128xf32>
      %28 = arith.mulf %26, %27 : vector<8x128xf32>
      %29 = math.exp %28 : vector<8x128xf32>
      %c0_15 = arith.constant 0 : index
      %c0_16 = arith.constant 0 : index
      %30 = vector.load %arg11[%c0_15, %c0_16] : memref<1x128xf32, #tpu.memory_space<vmem>>, vector<1x128xf32>
      %31 = vector.broadcast %30 : vector<1x128xf32> to vector<8x128xf32>
      %32 = arith.mulf %29, %31 : vector<8x128xf32>
      %cst_17 = arith.constant dense<0.000000e+00> : vector<8xf32>
      %33 = vector.multi_reduction <add>, %32, %cst_17 [1] : vector<8x128xf32> to vector<8xf32>
      %34 = vector.shape_cast %33 : vector<8xf32> to vector<8x1xf32>
      %c0_18 = arith.constant 0 : index
      %c0_19 = arith.constant 0 : index
      %35 = vector.load %arg8[%c0_18, %c0_19] : memref<1x1xf32, #tpu.memory_space<vmem>>, vector<1x1xf32>
      %cst_20 = arith.constant 9.99999993E-9 : f32
      %36 = vector.broadcast %cst_20 : f32 to vector<8x1xf32>
      %37 = arith.addf %34, %36 : vector<8x1xf32>
      %38 = math.log %37 : vector<8x1xf32>
      %39 = vector.shape_cast %38 : vector<8x1xf32> to vector<1x8x1xf32>
      %cst_21 = arith.constant dense<0.000000e+00> : vector<1xf32>
      %40 = vector.multi_reduction <add>, %39, %cst_21 [1, 2] : vector<1x8x1xf32> to vector<1xf32>
      %41 = vector.shape_cast %40 : vector<1xf32> to vector<1x1x1xf32>
      %42 = vector.extract %41[0, 0, 0] : f32 from vector<1x1x1xf32>
      %43 = vector.broadcast %42 : f32 to vector<1x1xf32>
      %44 = arith.addf %35, %43 : vector<1x1xf32>
      %c0_22 = arith.constant 0 : index
      %c0_23 = arith.constant 0 : index
      %45 = vector.load %arg8[%c0_22, %c0_23] : memref<1x1xf32, #tpu.memory_space<vmem>>, vector<1x1xf32>
      tpu.vector_store %arg8[%c0_22, %c0_23], %44 {strides = array<i32>} : memref<1x1xf32, #tpu.memory_space<vmem>>, vector<1x1xf32>,
      %c1_i32_24 = arith.constant 1 : i32
      %46 = arith.cmpi eq, %arg1, %c1_i32_24 : i32
      %47 = arith.extui %46 : i1 to i32
      %c0_i32_25 = arith.constant 0 : i32
      %48 = arith.cmpi ne, %47, %c0_i32_25 : i32
      scf.if %48 {
        %c0_26 = arith.constant 0 : index
        %c0_27 = arith.constant 0 : index
        %49 = vector.load %arg8[%c0_26, %c0_27] : memref<1x1xf32, #tpu.memory_space<vmem>>, vector<1x1xf32>
        %c0_28 = arith.constant 0 : index
        %c0_29 = arith.constant 0 : index
        %50 = vector.load %arg4[%c0_28, %c0_29] : memref<1x1xf32, #tpu.memory_space<vmem>>, vector<1x1xf32>
        tpu.vector_store %arg4[%c0_28, %c0_29], %49 {strides = array<i32>} : memref<1x1xf32, #tpu.memory_space<vmem>>, vector<1x1xf32>,
      } else {
      }
    } else {
    }
    return
  }
  func.func @transform_0(%arg0: i32, %arg1: i32) -> (i32, i32) {
    %c0_i32 = arith.constant 0 : i32
    %c0_i32_0 = arith.constant 0 : i32
    return %arg1, %c0_i32 : i32, i32
  }
  func.func @transform_1(%arg0: i32, %arg1: i32) -> (i32, i32, i32) {
    %c0_i32 = arith.constant 0 : i32
    %c0_i32_0 = arith.constant 0 : i32
    %c0_i32_1 = arith.constant 0 : i32
    return %arg1, %c0_i32, %c0_i32_0 : i32, i32, i32
  }
  func.func @transform_2(%arg0: i32, %arg1: i32) -> (i32, i32) {
    %c0_i32 = arith.constant 0 : i32
    %c0_i32_0 = arith.constant 0 : i32
    %c0_i32_1 = arith.constant 0 : i32
    return %c0_i32, %c0_i32_0 : i32, i32
  }
}

</mosaic_0001>

<llo_original>
// kernel: tpu_custom_call.1
$region0: #{tpu_custom_call.1}
  #allocation0 [shape = 'u32[]', space=smem, size = 0x4, offset = 0x4, fixed_abs, tag = 'smem constant byte address 0x4 - core index']
  #allocation1 [shape = 'u32[72,128]{1,0:T(1,128)}', space=vmem, size = 0x9000, scoped, tag = 'internal scratch']
  #allocation2 [shape = 'f32[128,128]{1,0:T(8,128)}', space=vmem, size = 0x10000, scoped, tag = 'scratch operand']
  #allocation3 [shape = 'f32[1,128]{1,0:T(1,128)}', space=vmem, size = 0x200, scoped, tag = 'scratch operand']
  #allocation4 [shape = 'f32[1,1]{1,0:T(1,128)}', space=vmem, size = 0x200, scoped, tag = 'scratch operand']
  #allocation5 [shape = 'f32[1,1]{1,0:T(1,128)}', space=vmem, size = 0x200, scoped, tag = 'scratch operand']
  #allocation6 [shape = 'f32[128,128]{1,0:T(8,128)}', space=vmem, size = 0x10000, scoped, tag = 'scratch operand']
  #allocation7 [shape = 'f32[1,128]{1,0:T(1,128)}', space=vmem, size = 0x200, scoped, tag = 'scratch operand']
  #allocation8 [shape = 'f32[1,128]{1,0:T(1,128)}', space=vmem, size = 0x200, scoped, tag = 'scratch operand']
  %s0 = inlined_call_operand.hbm [shape: f32[16,128], index: 0, kind: input, shape index: {}]
  %s1 = inlined_call_operand.hbm [shape: s32[2,1,8], index: 1, kind: input, shape index: {}]
  %s2 = inlined_call_operand.hbm [shape: f32[1,1], index: 2, kind: output, shape index: {}]
  %s3 = sld [smem:[#allocation0]]
  $region69: #{tpu_custom_call.1} parent=0
    _
  %s5 = ssub.s32 1, %s3
  %s6 = scalar_select 0, %s5, %s3
  $region1: #{tpu_custom_call.1} parent=0
    #allocation9 [shape = 'u8[8192]{0}', space=vmem, size = 0x2000, scoped, tag = 'input window, operand 0']
    #allocation10 [shape = 's32[2]{0}', space=sflag, size = 0x8, scoped, tag = 'scoped memory for tpu_custom_call.1']
    #allocation11 [shape = 's32[2]{0}', space=sflag, size = 0x8, scoped, tag = 'scoped memory for tpu_custom_call.1']
    #allocation12 [shape = 'u8[1024]{0}', space=vmem, size = 0x400, scoped, tag = 'input window, operand 1']
    #allocation13 [shape = 's32[2]{0}', space=sflag, size = 0x8, scoped, tag = 'scoped memory for tpu_custom_call.1']
    #allocation14 [shape = 'u8[512]{0}', space=vmem, size = 0x400, scoped, tag = 'output window, operand 0, single buffered']
    %7 = vsyncpa [#allocation10], 0
    %s8 = scalar_lea.sflag [#allocation10], 1
    %9 = vsyncpa %s8, 0
    %10 = vsyncpa [#allocation13], 0
    %s11 = scalar_lea.sflag [#allocation13], 1
    %12 = vsyncpa %s11, 0
    %13 = vsyncpa [#allocation11], 0
    loop: start=0, step=1, limit=6
    $region2: #{tpu_custom_call.1} parent=1 // loop_pre_header
      _
    $region3: #{tpu_custom_call.1} parent=1 // loop_header
      %s15 = sphi 0, %s19
      %p16 = scmp.ge.s32.totalorder %s15, 6
      %s22 = sphi 0, %s34
      %s23 = sphi 0, %s30
      %s24 = sphi 0, %s22
      %s25 = sphi 0, %s23
      %s26 = sphi 0, %s24
      %s27 = sphi 0, %s25
      %s37 = sphi 0, %s39
      %s40 = sphi 0, %s37
      %s41 = sphi 0, %s40
      %s57 = sphi 0, %s41
      %s63 = sphi 0, %s65
      %s66 = sphi 0, %s63
      %s67 = sphi 0, %s66
      %s83 = sphi 0, %s67
      %s87 = sphi 0, %s87
      %s89 = sphi 0, %s87
      %s90 = sphi 0, %s89
      %s104 = sphi 0, %s90
    $region4: #{tpu_custom_call.1} parent=1 // loop_header_branch
      %18 = sbr.rel (%p16) target = $region8
    $region5: #{tpu_custom_call.1} parent=1 // loop_body
      %s20 = ssub.s32 %s15, 1
      %s21 = ssub.s32 %s15, 2
      %s28 = sadd.s32 1, %s23
      %p29 = scmp.ge.s32.totalorder %s28, 2
      %s30 = scalar_select %p29, 0, %s28
      %s31 = sadd.s32 1, %s22
      %s32 = scalar_select %p29, %s31, %s22
      %p33 = scmp.ge.s32.totalorder %s32, 2
      %s34 = scalar_select %p33, 0, %s32
      %s35 = ssub.s32 %s23, %s30
      %p36 = scmp.eq.s32.totalorder %s35, 0
      %s38 = sadd.s32 %s37, 1
      %s39 = scalar_select %p36, %s37, %s38
      %p42 = pneg %p36
      %p43 = scmp.eq.s32.totalorder %s15, 3
      %p44 = por %p42, %p43
      %p45 = scmp.ne.s32.totalorder %s37, %s40
      %p46 = scmp.eq.s32.totalorder %s15, 0
      %p47 = por %p45, %p46
      %p48 = scmp.ne.s32.totalorder %s37, %s40
      %p49 = scmp.eq.s32.totalorder %s20, 3
      %p50 = por %p48, %p49
      %p51 = scmp.ne.s32.totalorder %s40, %s41
      %p52 = scmp.eq.s32.totalorder %s20, 0
      %p53 = por %p51, %p52
      %p54 = scmp.ne.s32.totalorder %s40, %s41
      %p55 = scmp.eq.s32.totalorder %s21, 3
      %p56 = por %p54, %p55
      %p58 = scmp.ne.s32.totalorder %s41, %s57
      %p59 = scmp.eq.s32.totalorder %s21, 0
      %p60 = por %p58, %p59
      %s61 = ssub.s32 %s23, %s30
      %p62 = scmp.eq.s32.totalorder %s61, 0
      %s64 = sadd.s32 %s63, 1
      %s65 = scalar_select %p62, %s63, %s64
      %p68 = pneg %p62
      %p69 = scmp.eq.s32.totalorder %s15, 3
      %p70 = por %p68, %p69
      %p71 = scmp.ne.s32.totalorder %s63, %s66
      %p72 = scmp.eq.s32.totalorder %s15, 0
      %p73 = por %p71, %p72
      %p74 = scmp.ne.s32.totalorder %s63, %s66
      %p75 = scmp.eq.s32.totalorder %s20, 3
      %p76 = por %p74, %p75
      %p77 = scmp.ne.s32.totalorder %s66, %s67
      %p78 = scmp.eq.s32.totalorder %s20, 0
      %p79 = por %p77, %p78
      %p80 = scmp.ne.s32.totalorder %s66, %s67
      %p81 = scmp.eq.s32.totalorder %s21, 3
      %p82 = por %p80, %p81
      %p84 = scmp.ne.s32.totalorder %s67, %s83
      %p85 = scmp.eq.s32.totalorder %s21, 0
      %p86 = por %p84, %p85
      %s88 = sadd.s32 %s87, 1
      %p91 = scmp.eq.s32.totalorder %s15, 3
      %p92 = scmp.ne.s32.totalorder %s87, %s89
      %p93 = scmp.eq.s32.totalorder %s15, 0
      %p94 = por %p92, %p93
      %p95 = scmp.ne.s32.totalorder %s87, %s89
      %p96 = scmp.eq.s32.totalorder %s20, 3
      %p97 = por %p95, %p96
      %p98 = scmp.ne.s32.totalorder %s89, %s90
      %p99 = scmp.eq.s32.totalorder %s20, 0
      %p100 = por %p98, %p99
      %p101 = scmp.ne.s32.totalorder %s89, %s90
      %p102 = scmp.eq.s32.totalorder %s21, 3
      %p103 = por %p101, %p102
      %p105 = scmp.ne.s32.totalorder %s90, %s104
      %p106 = scmp.eq.s32.totalorder %s21, 0
      %p107 = por %p105, %p106
      %p108 = scmp.le.s32.totalorder 1, %s15
      %p109 = scmp.lt.s32.totalorder %s15, 5
      %p110 = pnand %p108, %p109
      %p111 = pneg %p110
      // Predicated region
      $region9: #{tpu_custom_call.1} parent=5 // pred_check
        _
      $region10: #{tpu_custom_call.1} parent=5 // pred_check_branch
        %113 = sbr.rel (%p110) target = $region12
      $region11: #{tpu_custom_call.1} parent=5 // pred_region
        %s114 = ssub.s32 %s15, 1
      $region12: #{tpu_custom_call.1} parent=5 // pred_fallthru
        _
      %p115 = scmp.lt.s32.totalorder %s15, 4
      // Predicated region
      $region13: #{tpu_custom_call.1} parent=5 // pred_check
        %p116 = pneg %p115
      $region14: #{tpu_custom_call.1} parent=5 // pred_check_branch
        %118 = sbr.rel (%p116) target = $region16
      $region15: #{tpu_custom_call.1} parent=5 // pred_region
        // Predicated region
        $region17: #{tpu_custom_call.1} parent=15 // pred_check
          %p119 = pneg %p47
        $region18: #{tpu_custom_call.1} parent=15 // pred_check_branch
          %121 = sbr.rel (%p119) target = $region20
        $region19: #{tpu_custom_call.1} parent=15 // pred_region
          %s122 = sand.u32 %s37, 1
          %s123 = scalar_lea.sflag [#allocation10], %s122
          %s124 = sand.u32 %s37, 1
          %s125 = smul.addr %s124, 8
          %s126 = scalar_lea.vmem [#allocation9], %s125
          %128 = vsyncadd %s123, 0
          %s129 = smul.addr %s23, 8
          %s130 = scalar_lea.hbm %s0, %s129
          %s132 = sshll.u32 %s130, 4
          %s133 = int_to_ptr.hbm [resolvable:$true] %s132
          %s134 = sshll.u32 %s126, 4
          %s135 = int_to_ptr.vmem [resolvable:$true] %s134
          %137 = dma.hbm_to_vmem [thread:$0]  %s133, 128, %s135, %s123
        $region20: #{tpu_custom_call.1} parent=15 // pred_fallthru
          _
        // Predicated region
        $region21: #{tpu_custom_call.1} parent=15 // pred_check
          %p138 = pneg %p73
        $region22: #{tpu_custom_call.1} parent=15 // pred_check_branch
          %140 = sbr.rel (%p138) target = $region24
        $region23: #{tpu_custom_call.1} parent=15 // pred_region
          %s141 = sand.u32 %s63, 1
          %s142 = scalar_lea.sflag [#allocation13], %s141
          %s143 = sand.u32 %s63, 1
          %s144 = scalar_lea.vmem [#allocation12], %s143
          %146 = vsyncadd %s142, 0
          %s147 = scalar_lea.hbm %s1, %s23
          %s149 = sshll.u32 %s147, 4
          %s150 = int_to_ptr.hbm [resolvable:$true] %s149
          %s151 = sshll.u32 %s144, 4
          %s152 = int_to_ptr.vmem [resolvable:$true] %s151
          %154 = dma.hbm_to_vmem [thread:$0]  %s150, 16, %s152, %s142
        $region24: #{tpu_custom_call.1} parent=15 // pred_fallthru
          _
      $region16: #{tpu_custom_call.1} parent=5 // pred_fallthru
        _
      %p155 = scmp.le.s32.totalorder 1, %s15
      %p156 = scmp.lt.s32.totalorder %s15, 5
      %p157 = pnand %p155, %p156
      %p158 = pneg %p157
      // Predicated region
      $region25: #{tpu_custom_call.1} parent=5 // pred_check
        _
      $region26: #{tpu_custom_call.1} parent=5 // pred_check_branch
        %160 = sbr.rel (%p157) target = $region28
      $region27: #{tpu_custom_call.1} parent=5 // pred_region
        %s161 = ssub.s32 %s15, 1
        %s162 = sand.u32 %s40, 1
        %s163 = scalar_lea.sflag [#allocation10], %s162
        %s164 = sand.u32 %s40, 1
        %s165 = smul.addr %s164, 8
        %s166 = scalar_lea.vmem [#allocation9], %s165
        // Predicated region
        $region29: #{tpu_custom_call.1} parent=27 // pred_check
          %p167 = pneg %p53
        $region30: #{tpu_custom_call.1} parent=27 // pred_check_branch
          %169 = sbr.rel (%p167) target = $region32
        $region31: #{tpu_custom_call.1} parent=27 // pred_region
          %171 = dma.done %s163, 128
        $region32: #{tpu_custom_call.1} parent=27 // pred_fallthru
          _
        %s172 = sand.u32 %s66, 1
        %s173 = scalar_lea.sflag [#allocation13], %s172
        %s174 = sand.u32 %s66, 1
        %s175 = scalar_lea.vmem [#allocation12], %s174
        // Predicated region
        $region33: #{tpu_custom_call.1} parent=27 // pred_check
          %p176 = pneg %p79
        $region34: #{tpu_custom_call.1} parent=27 // pred_check_branch
          %178 = sbr.rel (%p176) target = $region36
        $region35: #{tpu_custom_call.1} parent=27 // pred_region
          %180 = dma.done %s173, 16
        $region36: #{tpu_custom_call.1} parent=27 // pred_fallthru
          _
        %s181 = sand.u32 %s40, 1
        %s182 = scalar_lea.sflag [#allocation10], %s181
        %s183 = sand.u32 %s40, 1
        %s184 = smul.addr %s183, 8
        %s185 = scalar_lea.vmem [#allocation9], %s184
        %p186 = pneg %p53
        %p187 = pneg %p50
        %s188 = sand.u32 %s66, 1
        %s189 = scalar_lea.sflag [#allocation13], %s188
        %s190 = sand.u32 %s66, 1
        %s191 = scalar_lea.vmem [#allocation12], %s190
        %p192 = pneg %p79
        %p193 = pneg %p76
        %p194 = pneg %p100
        %p195 = pneg %p97
        %p196 = scmp.eq.s32.totalorder %s24, 0
        %p197 = scmp.eq.s32.totalorder %s25, 0
        %p198 = pnand %p196, %p197
        %p199 = pneg %p198
        // Predicated region
        $region37: #{tpu_custom_call.1} parent=27 // pred_check
          _
        $region38: #{tpu_custom_call.1} parent=27 // pred_check_branch
          %201 = sbr.rel (%p198) target = $region40
        $region39: #{tpu_custom_call.1} parent=27 // pred_region
          %202 = vst [vmem:[#allocation2] sm:$0xff] 0.0
          %203 = vst [vmem:[#allocation2 + $0x8] sm:$0xff] 0.0
          %204 = vst [vmem:[#allocation2 + $0x10] sm:$0xff] 0.0
          %205 = vst [vmem:[#allocation2 + $0x18] sm:$0xff] 0.0
          %206 = vst [vmem:[#allocation2 + $0x20] sm:$0xff] 0.0
          %207 = vst [vmem:[#allocation2 + $0x28] sm:$0xff] 0.0
          %208 = vst [vmem:[#allocation2 + $0x30] sm:$0xff] 0.0
          %209 = vst [vmem:[#allocation2 + $0x38] sm:$0xff] 0.0
          %210 = vst [vmem:[#allocation2 + $0x40] sm:$0xff] 0.0
          %211 = vst [vmem:[#allocation2 + $0x48] sm:$0xff] 0.0
          %212 = vst [vmem:[#allocation2 + $0x50] sm:$0xff] 0.0
          %213 = vst [vmem:[#allocation2 + $0x58] sm:$0xff] 0.0
          %214 = vst [vmem:[#allocation2 + $0x60] sm:$0xff] 0.0
          %215 = vst [vmem:[#allocation2 + $0x68] sm:$0xff] 0.0
          %216 = vst [vmem:[#allocation2 + $0x70] sm:$0xff] 0.0
          %217 = vst [vmem:[#allocation2 + $0x78] sm:$0xff] 0.0
          %218 = vst [vmem:[#allocation3] sm:$0x1] 0.0
          %vm219 = vcmask 0
          %220 = vst.msk [vmem:[#allocation4] sm:$0x1] %vm219, 0.0
          %221 = vst.msk [vmem:[#allocation5] sm:$0x1] %vm219, 0.0
        $region40: #{tpu_custom_call.1} parent=27 // pred_fallthru
          _
        // Predicated region
        $region41: #{tpu_custom_call.1} parent=27 // pred_check
          %p222 = pneg %p196
        $region42: #{tpu_custom_call.1} parent=27 // pred_check_branch
          %224 = sbr.rel (%p222) target = $region44
        $region43: #{tpu_custom_call.1} parent=27 // pred_region
          %v225 = vld [vmem:[%s166] sm:$0xff]
          %v226 = vld [vmem:[%s175] sm:$0x1]
          %v227 = vlaneseq
          %v228 = vshrl.u32 %v227, 7
          %v229 = vadd.s32 %v228, 8
          %v230 = vadd.s32 %v228, 16
          %v231 = vadd.s32 %v228, 24
          %v232 = vadd.s32 %v228, 32
          %v233 = vadd.s32 %v228, 40
          %v234 = vadd.s32 %v228, 48
          %v235 = vadd.s32 %v228, 56
          %v236 = vadd.s32 %v228, 64
          %v237 = vadd.s32 %v228, 72
          %v238 = vadd.s32 %v228, 80
          %v239 = vadd.s32 %v228, 88
          %v240 = vadd.s32 %v228, 96
          %v241 = vadd.s32 %v228, 104
          %v242 = vadd.s32 %v228, 112
          %v243 = vadd.s32 %v228, 120
          %v244 = vperm.slane %v226, 0
          %vm245 = vcmp.eq.s32.totalorder %v228, %v244
          %vm246 = vcmp.eq.s32.totalorder %v229, %v244
          %vm247 = vcmp.eq.s32.totalorder %v230, %v244
          %vm248 = vcmp.eq.s32.totalorder %v231, %v244
          %vm249 = vcmp.eq.s32.totalorder %v232, %v244
          %vm250 = vcmp.eq.s32.totalorder %v233, %v244
          %vm251 = vcmp.eq.s32.totalorder %v234, %v244
          %vm252 = vcmp.eq.s32.totalorder %v235, %v244
          %vm253 = vcmp.eq.s32.totalorder %v236, %v244
          %vm254 = vcmp.eq.s32.totalorder %v237, %v244
          %vm255 = vcmp.eq.s32.totalorder %v238, %v244
          %vm256 = vcmp.eq.s32.totalorder %v239, %v244
          %vm257 = vcmp.eq.s32.totalorder %v240, %v244
          %vm258 = vcmp.eq.s32.totalorder %v241, %v244
          %vm259 = vcmp.eq.s32.totalorder %v242, %v244
          %vm260 = vcmp.eq.s32.totalorder %v243, %v244
          %v261 = vsel %vm245, 1, 0
          %v262 = vsel %vm246, 1, 0
          %v263 = vsel %vm247, 1, 0
          %v264 = vsel %vm248, 1, 0
          %v265 = vsel %vm249, 1, 0
          %v266 = vsel %vm250, 1, 0
          %v267 = vsel %vm251, 1, 0
          %v268 = vsel %vm252, 1, 0
          %v269 = vsel %vm253, 1, 0
          %v270 = vsel %vm254, 1, 0
          %v271 = vsel %vm255, 1, 0
          %v272 = vsel %vm256, 1, 0
          %v273 = vsel %vm257, 1, 0
          %v274 = vsel %vm258, 1, 0
          %v275 = vsel %vm259, 1, 0
          %v276 = vsel %vm260, 1, 0
          %v277 = vcvt.s32.f32 %v261
          %v278 = vcvt.s32.f32 %v262
          %v279 = vcvt.s32.f32 %v263
          %v280 = vcvt.s32.f32 %v264
          %v281 = vcvt.s32.f32 %v265
          %v282 = vcvt.s32.f32 %v266
          %v283 = vcvt.s32.f32 %v267
          %v284 = vcvt.s32.f32 %v268
          %v285 = vcvt.s32.f32 %v269
          %v286 = vcvt.s32.f32 %v270
          %v287 = vcvt.s32.f32 %v271
          %v288 = vcvt.s32.f32 %v272
          %v289 = vcvt.s32.f32 %v273
          %v290 = vcvt.s32.f32 %v274
          %v291 = vcvt.s32.f32 %v275
          %v292 = vcvt.s32.f32 %v276
          %v293 = vld [vmem:[#allocation2] sm:$0xff]
          %v294 = vld [vmem:[#allocation2 + $0x8] sm:$0xff]
          %v295 = vld [vmem:[#allocation2 + $0x10] sm:$0xff]
          %v296 = vld [vmem:[#allocation2 + $0x18] sm:$0xff]
          %v297 = vld [vmem:[#allocation2 + $0x20] sm:$0xff]
          %v298 = vld [vmem:[#allocation2 + $0x28] sm:$0xff]
          %v299 = vld [vmem:[#allocation2 + $0x30] sm:$0xff]
          %v300 = vld [vmem:[#allocation2 + $0x38] sm:$0xff]
          %v301 = vld [vmem:[#allocation2 + $0x40] sm:$0xff]
          %v302 = vld [vmem:[#allocation2 + $0x48] sm:$0xff]
          %v303 = vld [vmem:[#allocation2 + $0x50] sm:$0xff]
          %v304 = vld [vmem:[#allocation2 + $0x58] sm:$0xff]
          %v305 = vld [vmem:[#allocation2 + $0x60] sm:$0xff]
          %v306 = vld [vmem:[#allocation2 + $0x68] sm:$0xff]
          %v307 = vld [vmem:[#allocation2 + $0x70] sm:$0xff]
          %v308 = vld [vmem:[#allocation2 + $0x78] sm:$0xff]
          %vm309 = vcmask 64512
          %v311 = vsel %vm309, %v277, 0
          %v314 = vsel %vm309, %v278, 0
          %v317 = vsel %vm309, %v279, 0
          %v320 = vsel %vm309, %v280, 0
          %v323 = vsel %vm309, %v281, 0
          %v326 = vsel %vm309, %v282, 0
          %v329 = vsel %vm309, %v283, 0
          %v332 = vsel %vm309, %v284, 0
          %v335 = vsel %vm309, %v285, 0
          %v338 = vsel %vm309, %v286, 0
          %v341 = vsel %vm309, %v287, 0
          %v344 = vsel %vm309, %v288, 0
          %v347 = vsel %vm309, %v289, 0
          %v350 = vsel %vm309, %v290, 0
          %v353 = vsel %vm309, %v291, 0
          %v356 = vsel %vm309, %v292, 0
          %358 = vmatpush.msra.mxu0 0.0
          %359 = vmatpush.msra.mxu0 0.0
          %360 = vmatpush.msra.mxu0 0.0
          %361 = vmatpush.msra.mxu0 0.0
          %362 = vmatpush.msra.mxu0 0.0
          %363 = vmatpush.msra.mxu0 0.0
          %364 = vmatpush.msra.mxu0 0.0
          %365 = vmatpush.msra.mxu0 0.0
          %366 = vmatpush.msra.mxu0 0.0
          %367 = vmatpush.msra.mxu0 0.0
          %368 = vmatpush.msra.mxu0 0.0
          %369 = vmatpush.msra.mxu0 0.0
          %370 = vmatpush.msra.mxu0 0.0
          %371 = vmatpush.msra.mxu0 0.0
          %372 = vmatpush.msra.mxu0 0.0
          %373 = vmatpush.msra.mxu0 %v225
          %374 = vmatmul.f32.gmra.mxu0 %v311
          %v375 = vpop.f32.mrf.mxu0
          %v376 = vadd.f32 0.0, %v375
          %377 = vmatmul.f32.gmra.mxu0 %v314
          %v378 = vpop.f32.mrf.mxu0
          %v379 = vadd.f32 0.0, %v378
          %380 = vmatmul.f32.gmra.mxu0 %v317
          %v381 = vpop.f32.mrf.mxu0
          %v382 = vadd.f32 0.0, %v381
          %383 = vmatmul.f32.gmra.mxu0 %v320
          %v384 = vpop.f32.mrf.mxu0
          %v385 = vadd.f32 0.0, %v384
          %386 = vmatmul.f32.gmra.mxu0 %v323
          %v387 = vpop.f32.mrf.mxu0
          %v388 = vadd.f32 0.0, %v387
          %389 = vmatmul.f32.gmra.mxu0 %v326
          %v390 = vpop.f32.mrf.mxu0
          %v391 = vadd.f32 0.0, %v390
          %392 = vmatmul.f32.gmra.mxu0 %v329
          %v393 = vpop.f32.mrf.mxu0
          %v394 = vadd.f32 0.0, %v393
          %395 = vmatmul.f32.gmra.mxu0 %v332
          %v396 = vpop.f32.mrf.mxu0
          %v397 = vadd.f32 0.0, %v396
          %398 = vmatmul.f32.gmra.mxu0 %v335
          %v399 = vpop.f32.mrf.mxu0
          %v400 = vadd.f32 0.0, %v399
          %401 = vmatmul.f32.gmra.mxu0 %v338
          %v402 = vpop.f32.mrf.mxu0
          %v403 = vadd.f32 0.0, %v402
          %404 = vmatmul.f32.gmra.mxu0 %v341
          %v405 = vpop.f32.mrf.mxu0
          %v406 = vadd.f32 0.0, %v405
          %407 = vmatmul.f32.gmra.mxu0 %v344
          %v408 = vpop.f32.mrf.mxu0
          %v409 = vadd.f32 0.0, %v408
          %410 = vmatmul.f32.gmra.mxu0 %v347
          %v411 = vpop.f32.mrf.mxu0
          %v412 = vadd.f32 0.0, %v411
          %413 = vmatmul.f32.gmra.mxu0 %v350
          %v414 = vpop.f32.mrf.mxu0
          %v415 = vadd.f32 0.0, %v414
          %416 = vmatmul.f32.gmra.mxu0 %v353
          %v417 = vpop.f32.mrf.mxu0
          %v418 = vadd.f32 0.0, %v417
          %419 = vmatmul.f32.gmra.mxu0 %v356
          %v420 = vpop.f32.mrf.mxu0
          %v421 = vadd.f32 0.0, %v420
          %422 = vdwg.mxu0
          %v423 = vadd.f32 %v293, %v376
          %v424 = vadd.f32 %v294, %v379
          %v425 = vadd.f32 %v295, %v382
          %v426 = vadd.f32 %v296, %v385
          %v427 = vadd.f32 %v297, %v388
          %v428 = vadd.f32 %v298, %v391
          %v429 = vadd.f32 %v299, %v394
          %v430 = vadd.f32 %v300, %v397
          %v431 = vadd.f32 %v301, %v400
          %v432 = vadd.f32 %v302, %v403
          %v433 = vadd.f32 %v303, %v406
          %v434 = vadd.f32 %v304, %v409
          %v435 = vadd.f32 %v305, %v412
          %v436 = vadd.f32 %v306, %v415
          %v437 = vadd.f32 %v307, %v418
          %v438 = vadd.f32 %v308, %v421
          %439 = vst [vmem:[#allocation2] sm:$0xff] %v423
          %440 = vst [vmem:[#allocation2 + $0x8] sm:$0xff] %v424
          %441 = vst [vmem:[#allocation2 + $0x10] sm:$0xff] %v425
          %442 = vst [vmem:[#allocation2 + $0x18] sm:$0xff] %v426
          %443 = vst [vmem:[#allocation2 + $0x20] sm:$0xff] %v427
          %444 = vst [vmem:[#allocation2 + $0x28] sm:$0xff] %v428
          %445 = vst [vmem:[#allocation2 + $0x30] sm:$0xff] %v429
          %446 = vst [vmem:[#allocation2 + $0x38] sm:$0xff] %v430
          %447 = vst [vmem:[#allocation2 + $0x40] sm:$0xff] %v431
          %448 = vst [vmem:[#allocation2 + $0x48] sm:$0xff] %v432
          %449 = vst [vmem:[#allocation2 + $0x50] sm:$0xff] %v433
          %450 = vst [vmem:[#allocation2 + $0x58] sm:$0xff] %v434
          %451 = vst [vmem:[#allocation2 + $0x60] sm:$0xff] %v435
          %452 = vst [vmem:[#allocation2 + $0x68] sm:$0xff] %v436
          %453 = vst [vmem:[#allocation2 + $0x70] sm:$0xff] %v437
          %454 = vst [vmem:[#allocation2 + $0x78] sm:$0xff] %v438
          %v456 = vsel %vm309, 1.0, 0
          %458 = vmatpush.xpose.msra.mxu0 %v356
          %459 = vmatpush.xpose.msra.mxu0 %v353
          %460 = vmatpush.xpose.msra.mxu0 %v350
          %461 = vmatpush.xpose.msra.mxu0 %v347
          %462 = vmatpush.xpose.msra.mxu0 %v344
          %463 = vmatpush.xpose.msra.mxu0 %v341
          %464 = vmatpush.xpose.msra.mxu0 %v338
          %465 = vmatpush.xpose.msra.mxu0 %v335
          %466 = vmatpush.xpose.msra.mxu0 %v332
          %467 = vmatpush.xpose.msra.mxu0 %v329
          %468 = vmatpush.xpose.msra.mxu0 %v326
          %469 = vmatpush.xpose.msra.mxu0 %v323
          %470 = vmatpush.xpose.msra.mxu0 %v320
          %471 = vmatpush.xpose.msra.mxu0 %v317
          %472 = vmatpush.xpose.msra.mxu0 %v314
          %473 = vmatpush.xpose.msra.mxu0 %v311
          %474 = vmatmul.f32.gmra.mxu0 %v456
          %v475 = vpop.f32.mrf.mxu0
          %v476 = vadd.f32 0.0, %v475
          %477 = vdwg.mxu0
          %v478 = vld [vmem:[#allocation3] sm:$0x1]
          %v479 = vadd.f32 %v478, %v476
          %480 = vst [vmem:[#allocation3] sm:$0x1] %v479
          %v481 = vld [vmem:[#allocation4] sm:$0x1]
          %v482 = vmul.f32 %v225, %v225
          %483 = vadd.xlane.f32.xlu0 %v482
          %v484 = vpop.xlane.xlu0 %483
          %v485 = vrot.slane %v484, 4
          %v486 = vadd.f32 %v484, %v485
          %v487 = vrot.slane %v486, 2
          %v488 = vadd.f32 %v486, %v487
          %v489 = vrot.slane %v488, 1
          %v490 = vadd.f32 %v488, %v489
          %s491 = vtos %v490
          %v492 = vstv %s491
          %v493 = vadd.f32 %v481, %v492
          %vm494 = vcmask 0
          %495 = vst.msk [vmem:[#allocation4] sm:$0x1] %vm494, %v493
        $region44: #{tpu_custom_call.1} parent=27 // pred_fallthru
          _
        %p496 = scmp.eq.s32.totalorder %s24, 1
        // Predicated region
        $region45: #{tpu_custom_call.1} parent=27 // pred_check
          %p497 = pneg %p496
        $region46: #{tpu_custom_call.1} parent=27 // pred_check_branch
          %499 = sbr.rel (%p497) target = $region48
        $region47: #{tpu_custom_call.1} parent=27 // pred_region
          // Predicated region
          $region49: #{tpu_custom_call.1} parent=47 // pred_check
            %p500 = pneg %p197
          $region50: #{tpu_custom_call.1} parent=47 // pred_check_branch
            %502 = sbr.rel (%p500) target = $region52
          $region51: #{tpu_custom_call.1} parent=47 // pred_region
            %v503 = vld [vmem:[#allocation2] sm:$0xff]
            %v504 = vld [vmem:[#allocation2 + $0x8] sm:$0xff]
            %v505 = vld [vmem:[#allocation2 + $0x10] sm:$0xff]
            %v506 = vld [vmem:[#allocation2 + $0x18] sm:$0xff]
            %v507 = vld [vmem:[#allocation2 + $0x20] sm:$0xff]
            %v508 = vld [vmem:[#allocation2 + $0x28] sm:$0xff]
            %v509 = vld [vmem:[#allocation2 + $0x30] sm:$0xff]
            %v510 = vld [vmem:[#allocation2 + $0x38] sm:$0xff]
            %v511 = vld [vmem:[#allocation2 + $0x40] sm:$0xff]
            %v512 = vld [vmem:[#allocation2 + $0x48] sm:$0xff]
            %v513 = vld [vmem:[#allocation2 + $0x50] sm:$0xff]
            %v514 = vld [vmem:[#allocation2 + $0x58] sm:$0xff]
            %v515 = vld [vmem:[#allocation2 + $0x60] sm:$0xff]
            %v516 = vld [vmem:[#allocation2 + $0x68] sm:$0xff]
            %v517 = vld [vmem:[#allocation2 + $0x70] sm:$0xff]
            %v518 = vld [vmem:[#allocation2 + $0x78] sm:$0xff]
            %v519 = vmul.f32 %v503, %v503
            %v520 = vmul.f32 %v504, %v504
            %v521 = vmul.f32 %v505, %v505
            %v522 = vmul.f32 %v506, %v506
            %v523 = vmul.f32 %v507, %v507
            %v524 = vmul.f32 %v508, %v508
            %v525 = vmul.f32 %v509, %v509
            %v526 = vmul.f32 %v510, %v510
            %v527 = vmul.f32 %v511, %v511
            %v528 = vmul.f32 %v512, %v512
            %v529 = vmul.f32 %v513, %v513
            %v530 = vmul.f32 %v514, %v514
            %v531 = vmul.f32 %v515, %v515
            %v532 = vmul.f32 %v516, %v516
            %v533 = vmul.f32 %v517, %v517
            %v534 = vmul.f32 %v518, %v518
            %535 = vmatpush.xpose.msra.mxu0 %v534
            %536 = vmatpush.xpose.msra.mxu0 %v533
            %537 = vmatpush.xpose.msra.mxu0 %v532
            %538 = vmatpush.xpose.msra.mxu0 %v531
            %539 = vmatpush.xpose.msra.mxu0 %v530
            %540 = vmatpush.xpose.msra.mxu0 %v529
            %541 = vmatpush.xpose.msra.mxu0 %v528
            %542 = vmatpush.xpose.msra.mxu0 %v527
            %543 = vmatpush.xpose.msra.mxu0 %v526
            %544 = vmatpush.xpose.msra.mxu0 %v525
            %545 = vmatpush.xpose.msra.mxu0 %v524
            %546 = vmatpush.xpose.msra.mxu0 %v523
            %547 = vmatpush.xpose.msra.mxu0 %v522
            %548 = vmatpush.xpose.msra.mxu0 %v521
            %549 = vmatpush.xpose.msra.mxu0 %v520
            %550 = vmatpush.xpose.msra.mxu0 %v519
            %551 = vmatmul.f32.gmra.mxu0 1.0
            %v552 = vpop.f32.mrf.mxu0
            %v553 = vadd.f32 0.0, %v552
            %554 = vdwg.mxu0
            %vm555 = vcmask 1040384
            %v556 = vsel %vm555, %v553, 0.0
            %557 = vadd.xlane.f32.xlu0 %v556
            %v558 = vpop.xlane.xlu0 %557
            %v559 = vld [vmem:[#allocation3] sm:$0x1]
            %v560 = vmul.f32 %v559, %v553
            %v561 = vsel %vm555, %v560, 0.0
            %562 = vadd.xlane.f32.xlu0 %v561
            %v563 = vpop.xlane.xlu0 %562
            %v564 = vld [vmem:[#allocation4] sm:$0x1]
            %v565 = vmul.f32 %v558, 0.125
            %v566 = vsub.f32 %v564, %v565
            %v567 = vmul.f32 %v563, 0.00390625
            %v568 = vadd.f32 %v566, %v567
            %v569 = vmul.f32 %v568, 0.5
            %vm570 = vcmask 0
            %571 = vst.msk [vmem:[#allocation5] sm:$0x1] %vm570, %v569
            %v572 = vmul.f32 %v553, 0.00390625
            %573 = vst [vmem:[#allocation7] sm:$0x1] %v572
            %v574 = vld [vmem:[#allocation2] sm:$0xff]
            %v575 = vld [vmem:[#allocation2 + $0x8] sm:$0xff]
            %v576 = vld [vmem:[#allocation2 + $0x10] sm:$0xff]
            %v577 = vld [vmem:[#allocation2 + $0x18] sm:$0xff]
            %v578 = vld [vmem:[#allocation2 + $0x20] sm:$0xff]
            %v579 = vld [vmem:[#allocation2 + $0x28] sm:$0xff]
            %v580 = vld [vmem:[#allocation2 + $0x30] sm:$0xff]
            %v581 = vld [vmem:[#allocation2 + $0x38] sm:$0xff]
            %v582 = vld [vmem:[#allocation2 + $0x40] sm:$0xff]
            %v583 = vld [vmem:[#allocation2 + $0x48] sm:$0xff]
            %v584 = vld [vmem:[#allocation2 + $0x50] sm:$0xff]
            %v585 = vld [vmem:[#allocation2 + $0x58] sm:$0xff]
            %v586 = vld [vmem:[#allocation2 + $0x60] sm:$0xff]
            %v587 = vld [vmem:[#allocation2 + $0x68] sm:$0xff]
            %v588 = vld [vmem:[#allocation2 + $0x70] sm:$0xff]
            %v589 = vld [vmem:[#allocation2 + $0x78] sm:$0xff]
            %v590 = vmul.f32 %v574, 0.0625
            %v591 = vmul.f32 %v575, 0.0625
            %v592 = vmul.f32 %v576, 0.0625
            %v593 = vmul.f32 %v577, 0.0625
            %v594 = vmul.f32 %v578, 0.0625
            %v595 = vmul.f32 %v579, 0.0625
            %v596 = vmul.f32 %v580, 0.0625
            %v597 = vmul.f32 %v581, 0.0625
            %v598 = vmul.f32 %v582, 0.0625
            %v599 = vmul.f32 %v583, 0.0625
            %v600 = vmul.f32 %v584, 0.0625
            %v601 = vmul.f32 %v585, 0.0625
            %v602 = vmul.f32 %v586, 0.0625
            %v603 = vmul.f32 %v587, 0.0625
            %v604 = vmul.f32 %v588, 0.0625
            %v605 = vmul.f32 %v589, 0.0625
            %606 = vst [vmem:[#allocation6] sm:$0xff] %v590
            %607 = vst [vmem:[#allocation6 + $0x8] sm:$0xff] %v591
            %608 = vst [vmem:[#allocation6 + $0x10] sm:$0xff] %v592
            %609 = vst [vmem:[#allocation6 + $0x18] sm:$0xff] %v593
            %610 = vst [vmem:[#allocation6 + $0x20] sm:$0xff] %v594
            %611 = vst [vmem:[#allocation6 + $0x28] sm:$0xff] %v595
            %612 = vst [vmem:[#allocation6 + $0x30] sm:$0xff] %v596
            %613 = vst [vmem:[#allocation6 + $0x38] sm:$0xff] %v597
            %614 = vst [vmem:[#allocation6 + $0x40] sm:$0xff] %v598
            %615 = vst [vmem:[#allocation6 + $0x48] sm:$0xff] %v599
            %616 = vst [vmem:[#allocation6 + $0x50] sm:$0xff] %v600
            %617 = vst [vmem:[#allocation6 + $0x58] sm:$0xff] %v601
            %618 = vst [vmem:[#allocation6 + $0x60] sm:$0xff] %v602
            %619 = vst [vmem:[#allocation6 + $0x68] sm:$0xff] %v603
            %620 = vst [vmem:[#allocation6 + $0x70] sm:$0xff] %v604
            %621 = vst [vmem:[#allocation6 + $0x78] sm:$0xff] %v605
            %v622 = vld [vmem:[#allocation3] sm:$0x1]
            %vm623 = vcmp.gt.f32.partialorder %v622, 0.0
            %v624 = vsel %vm623, 1, 0
            %v625 = vcvt.s32.f32 %v624
            %626 = vst [vmem:[#allocation8] sm:$0x1] %v625
          $region52: #{tpu_custom_call.1} parent=47 // pred_fallthru
            _
          %v627 = vld [vmem:[%s166] sm:$0xff]
          %v628 = vmul.f32 %v627, %v627
          %629 = vadd.xlane.f32.xlu0 %v628
          %v630 = vpop.xlane.xlu0 %629
          %v631 = vld [vmem:[#allocation6] sm:$0xff]
          %v632 = vld [vmem:[#allocation6 + $0x8] sm:$0xff]
          %v633 = vld [vmem:[#allocation6 + $0x10] sm:$0xff]
          %v634 = vld [vmem:[#allocation6 + $0x18] sm:$0xff]
          %v635 = vld [vmem:[#allocation6 + $0x20] sm:$0xff]
          %v636 = vld [vmem:[#allocation6 + $0x28] sm:$0xff]
          %v637 = vld [vmem:[#allocation6 + $0x30] sm:$0xff]
          %v638 = vld [vmem:[#allocation6 + $0x38] sm:$0xff]
          %v639 = vld [vmem:[#allocation6 + $0x40] sm:$0xff]
          %v640 = vld [vmem:[#allocation6 + $0x48] sm:$0xff]
          %v641 = vld [vmem:[#allocation6 + $0x50] sm:$0xff]
          %v642 = vld [vmem:[#allocation6 + $0x58] sm:$0xff]
          %v643 = vld [vmem:[#allocation6 + $0x60] sm:$0xff]
          %v644 = vld [vmem:[#allocation6 + $0x68] sm:$0xff]
          %v645 = vld [vmem:[#allocation6 + $0x70] sm:$0xff]
          %v646 = vld [vmem:[#allocation6 + $0x78] sm:$0xff]
          %647 = vmatpush.xpose.msra.mxu0 %v646
          %648 = vmatpush.xpose.msra.mxu0 %v645
          %649 = vmatpush.xpose.msra.mxu0 %v644
          %650 = vmatpush.xpose.msra.mxu0 %v643
          %651 = vmatpush.xpose.msra.mxu0 %v642
          %652 = vmatpush.xpose.msra.mxu0 %v641
          %653 = vmatpush.xpose.msra.mxu0 %v640
          %654 = vmatpush.xpose.msra.mxu0 %v639
          %655 = vmatpush.xpose.msra.mxu0 %v638
          %656 = vmatpush.xpose.msra.mxu0 %v637
          %657 = vmatpush.xpose.msra.mxu0 %v636
          %658 = vmatpush.xpose.msra.mxu0 %v635
          %659 = vmatpush.xpose.msra.mxu0 %v634
          %660 = vmatpush.xpose.msra.mxu0 %v633
          %661 = vmatpush.xpose.msra.mxu0 %v632
          %662 = vmatpush.xpose.msra.mxu0 %v631
          %663 = vmatmul.f32.gmra.mxu0 %v627
          %v664 = vpop.f32.mrf.mxu0
          %v665 = vadd.f32 0.0, %v664
          %666 = vdwg.mxu0
          %v667 = vmul.f32 %v665, 2.0
          %v668 = vsub.f32 %v667, %v630
          %v669 = vld [vmem:[#allocation7] sm:$0x1]
          %v671 = vperm.slane %v669, 0
          %v673 = vsub.f32 %v668, %v671
          %v674 = vmul.f32 %v673, 0.5
          %v675 = vmul.f32 %v674, 1.442695
          %v676 = vpow.pop %v675
          %v677 = vld [vmem:[#allocation8] sm:$0x1]
          %v679 = vperm.slane %v677, 0
          %v681 = vmul.f32 %v676, %v679
          %682 = vadd.xlane.f32.xlu0 %v681
          %v683 = vpop.xlane.xlu0 %682
          %v684 = vld [vmem:[#allocation5] sm:$0x1]
          %v685 = vadd.f32 %v683, 1e-08
          %v686 = vlog2.pop %v685
          %v687 = vmul.f32 %v686, 0.6931472
          %vm688 = vcmask 7168
          %v689 = vsel %vm688, %v687, 0.0
          %690 = vadd.xlane.f32.xlu0 %v689
          %v691 = vpop.xlane.xlu0 %690
          %v692 = vrot.slane %v691, 4
          %v693 = vadd.f32 %v691, %v692
          %v694 = vrot.slane %v693, 2
          %v695 = vadd.f32 %v693, %v694
          %v696 = vrot.slane %v695, 1
          %v697 = vadd.f32 %v695, %v696
          %s698 = vtos %v697
          %v699 = vstv %s698
          %v700 = vadd.f32 %v684, %v699
          %vm701 = vcmask 0
          %702 = vst.msk [vmem:[#allocation5] sm:$0x1] %vm701, %v700
          %p703 = scmp.eq.s32.totalorder %s25, 1
          // Predicated region
          $region53: #{tpu_custom_call.1} parent=47 // pred_check
            %p704 = pneg %p703
          $region54: #{tpu_custom_call.1} parent=47 // pred_check_branch
            %706 = sbr.rel (%p704) target = $region56
          $region55: #{tpu_custom_call.1} parent=47 // pred_region
            %v707 = vld [vmem:[#allocation5] sm:$0x1]
            %708 = vst.msk [vmem:[#allocation14] sm:$0x1] %vm701, %v707
          $region56: #{tpu_custom_call.1} parent=47 // pred_fallthru
            _
        $region48: #{tpu_custom_call.1} parent=27 // pred_fallthru
          _
        // Predicated region
        $region57: #{tpu_custom_call.1} parent=27 // pred_check
          %p709 = pneg %p97
        $region58: #{tpu_custom_call.1} parent=27 // pred_check_branch
          %711 = sbr.rel (%p709) target = $region60
        $region59: #{tpu_custom_call.1} parent=27 // pred_region
          %713 = vsyncadd [#allocation11], 0
          %s715 = sshll.u32 [#allocation14], 4
          %s716 = int_to_ptr.vmem [resolvable:$true] %s715
          %s717 = sshll.u32 %s2, 4
          %s718 = int_to_ptr.hbm [resolvable:$true] %s717
          %720 = dma.vmem_to_hbm [thread:$0]  %s716, 16, %s718, [#allocation11]
        $region60: #{tpu_custom_call.1} parent=27 // pred_fallthru
          _
        // Predicated region
        $region61: #{tpu_custom_call.1} parent=27 // pred_check
          %p721 = pneg %p97
        $region62: #{tpu_custom_call.1} parent=27 // pred_check_branch
          %723 = sbr.rel (%p721) target = $region64
        $region63: #{tpu_custom_call.1} parent=27 // pred_region
          %725 = dma.done [#allocation11], 16
        $region64: #{tpu_custom_call.1} parent=27 // pred_fallthru
          _
      $region28: #{tpu_custom_call.1} parent=5 // pred_fallthru
        _
      %p726 = scmp.le.s32.totalorder 2, %s15
      // Predicated region
      $region65: #{tpu_custom_call.1} parent=5 // pred_check
        %p727 = pneg %p726
      $region66: #{tpu_custom_call.1} parent=5 // pred_check_branch
        %729 = sbr.rel (%p727) target = $region68
      $region67: #{tpu_custom_call.1} parent=5 // pred_region
        %s730 = ssub.s32 %s15, 2
      $region68: #{tpu_custom_call.1} parent=5 // pred_fallthru
        _
    $region6: #{tpu_custom_call.1} parent=1 // loop_footer
      %s19 = sadd.s32 1, %s15
    $region7: #{tpu_custom_call.1} parent=1 // loop_footer_branch
      %14 = sbr.rel target = $region3
    $region8: #{tpu_custom_call.1} parent=1 // loop_exit
      _
    %731 = vsyncpa [#allocation10], 1
    %s732 = scalar_lea.sflag [#allocation10], 1
    %733 = vsyncpa %s732, 1
    %734 = vsyncpa [#allocation13], 1
    %s735 = scalar_lea.sflag [#allocation13], 1
    %736 = vsyncpa %s735, 1
    %737 = vsyncpa [#allocation11], 1
    %s738 = scalar_lea.sflag [#allocation11], 1
    %739 = vsyncpa %s738, 1

</llo_original>
